<compile_context>
chip_gen: v5e
topology: v5e:2x2
jax: 0.10.0
libtpu: 0.0.40
codegen_flags: <defaults>
</compile_context>

<pallas_src>
import functools
import math

import jax
import jax.numpy as jnp
from jax.experimental import pallas as pl
from jax.experimental.pallas import tpu as pltpu


LANE = 128                       # TPU vreg lane width
_MIN_ROWS_FOR_CORE_SPLIT = 512   # below this, per-grid-step overhead dominates


def _cdiv(a, b):
    return (a + b - 1) // b


def _round_up(x, m):
    return _cdiv(x, m) * m


# ---------------------------------------------------------------------------
# Kernels
# ---------------------------------------------------------------------------
def _linear_relu_chain(x, w1_ref, b1_ref, w2_ref, b2_ref, w3_ref, b3_ref, mxu_dtype):
    """fc1 -> ReLU -> fc2 -> ReLU -> fc4 for one (already MXU-dtype) batch tile.

    Weights are used in their stored dtype (bf16 by default); accumulation,
    bias-add and ReLU are f32.
    """
    h1 = jnp.dot(x, w1_ref[...], preferred_element_type=jnp.float32) + b1_ref[...]
    h1 = jnp.maximum(h1, 0.0)
    h2 = jnp.dot(h1.astype(mxu_dtype), w2_ref[...],
                 preferred_element_type=jnp.float32) + b2_ref[...]
    h2 = jnp.maximum(h2, 0.0)
    return jnp.dot(h2.astype(mxu_dtype), w3_ref[...],
                   preferred_element_type=jnp.float32) + b3_ref[...]


def _mlp_kernel(x_ref, w1_ref, b1_ref, w2_ref, b2_ref, w3_ref, b3_ref, o_ref,
                *, mxu_dtype):
    x = x_ref[...].astype(mxu_dtype)
    out = _linear_relu_chain(x, w1_ref, b1_ref, w2_ref, b2_ref, w3_ref, b3_ref,
                             mxu_dtype)
    o_ref[...] = out.astype(o_ref.dtype)


def _dual_mlp_kernel(x_ref,
                     ow1, ob1, ow2, ob2, ow3, ob3,
                     tw1, tb1, tw2, tb2, tw3, tb3,
                     qo_ref, qt_ref, *, mxu_dtype):
    # Online + target network share the state tile (one state DMA, one launch).
    x = x_ref[...].astype(mxu_dtype)
    qo = _linear_relu_chain(x, ow1, ob1, ow2, ob2, ow3, ob3, mxu_dtype)
    qt = _linear_relu_chain(x, tw1, tb1, tw2, tb2, tw3, tb3, mxu_dtype)
    qo_ref[...] = qo.astype(qo_ref.dtype)
    qt_ref[...] = qt.astype(qt_ref.dtype)
    # TODO(synk): fuse the per-row argmax / TD-target math (r + gamma*max_a Q_t)
    # into this epilogue once the training step is ported; that removes the
    # wrapper-level slice/argmax XLA ops and shrinks output writeback ~128x.


# ---------------------------------------------------------------------------
# Parameter preparation / init
# ---------------------------------------------------------------------------
def prepare_params(params, lane=LANE, weight_dtype=jnp.bfloat16):
    """Zero-pad hidden dims and n_actions to lane multiples; cast weights.

    Zero padding is exact: padded hidden columns are relu(0 + 0) = 0 and the
    corresponding padded weight rows are 0, so they contribute nothing.
    Weights are stored in `weight_dtype` (bf16 by default -> halves weight DMA
    and is MXU-native on v5e); biases stay f32 (added after f32 accumulation).
    input_dims is deliberately NOT padded.
    """
    w1, b1, w2, b2, w3, b3 = params
    f1, f2, na = w1.shape[1], w2.shape[1], w3.shape[1]
    f1p, f2p, nap = _round_up(f1, lane), _round_up(f2, lane), _round_up(na, lane)
    w1p = jnp.pad(w1, ((0, 0), (0, f1p - f1))).astype(weight_dtype)
    b1p = jnp.pad(b1, ((0, 0), (0, f1p - f1))).astype(jnp.float32)
    w2p = jnp.pad(w2, ((0, f1p - f1), (0, f2p - f2))).astype(weight_dtype)
    b2p = jnp.pad(b2, ((0, 0), (0, f2p - f2))).astype(jnp.float32)
    w3p = jnp.pad(w3, ((0, f2p - f2), (0, nap - na))).astype(weight_dtype)
    b3p = jnp.pad(b3, ((0, 0), (0, nap - na))).astype(jnp.float32)
    return (w1p, b1p, w2p, b2p, w3p, b3p)


def init_params(key, input_dims, fc1_dims, fc2_dims, n_actions):
    """Deterministic init mimicking nn.Linear's default U(-1/sqrt(fan_in), ...)."""
    ks = jax.random.split(key, 6)

    def linear(kw, kb, fan_in, fan_out):
        bound = 1.0 / math.sqrt(fan_in)
        # stored as (in, out) so the kernel does x @ W
        w = jax.random.uniform(kw, (fan_in, fan_out), jnp.float32, -bound, bound)
        b = jax.random.uniform(kb, (1, fan_out), jnp.float32, -bound, bound)
        return w, b

    w1, b1 = linear(ks[0], ks[1], input_dims, fc1_dims)
    w2, b2 = linear(ks[2], ks[3], fc1_dims, fc2_dims)
    w3, b3 = linear(ks[4], ks[5], fc2_dims, n_actions)
    return (w1, b1, w2, b2, w3, b3)


# ---------------------------------------------------------------------------
# Wrappers
# ---------------------------------------------------------------------------
def _batch_tiling(batch, block_batch):
    """Even-split the batch into >=1 tiles of <= block_batch rows (mult. of 8).

    For batches large enough to keep both v7x TensorCores busy, force at least
    two 'parallel' grid steps.
    """
    num_steps = max(1, _cdiv(batch, block_batch))
    if batch >= _MIN_ROWS_FOR_CORE_SPLIT and num_steps < 2:
        num_steps = 2
    tb = _round_up(_cdiv(batch, num_steps), 8)
    grid_steps = _cdiv(batch, tb)
    batch_pad = grid_steps * tb
    return tb, grid_steps, batch_pad


def _const_spec(arr):
    # Constant index_map -> the block stays VMEM-resident across grid steps.
    return pl.BlockSpec(arr.shape, lambda i: (0, 0))


def dqn_forward(state, padded_params, n_actions, *, block_batch=1024,
                mxu_dtype=jnp.bfloat16, out_dtype=jnp.float32):
    """Forward pass of DeepQNetwork via one Pallas TPU kernel, tiled over batch."""
    w1, b1, w2, b2, w3, b3 = padded_params
    batch, in_dims = state.shape
    n_act_pad = w3.shape[1]

    tb, grid_steps, batch_pad = _batch_tiling(batch, block_batch)
    if batch_pad != batch:
        state = jnp.pad(state, ((0, batch_pad - batch), (0, 0)))

    out = pl.pallas_call(
        functools.partial(_mlp_kernel, mxu_dtype=mxu_dtype),
        out_shape=jax.ShapeDtypeStruct((batch_pad, n_act_pad), out_dtype),
        grid_spec=pltpu.PrefetchScalarGridSpec(
            num_scalar_prefetch=0,
            grid=(grid_steps,),
            in_specs=[
                # state: tiled over the batch grid axis (in_dims kept unpadded)
                pl.BlockSpec((tb, in_dims), lambda i: (i, 0)),
                _const_spec(w1), _const_spec(b1),
                _const_spec(w2), _const_spec(b2),
                _const_spec(w3), _const_spec(b3),
            ],
            out_specs=pl.BlockSpec((tb, n_act_pad), lambda i: (i, 0)),
        ),
        compiler_params=pltpu.CompilerParams(
            dimension_semantics=("parallel",),   # batch tiles across TensorCores
            vmem_limit_bytes=32 << 20,
        ),
    )(state, w1, b1, w2, b2, w3, b3)

    # Slice away the batch padding and the lane padding on n_actions.
    return out[:batch, :n_actions]


def dqn_forward_dual(state, online_padded, target_padded, n_actions, *,
                     block_batch=1024, mxu_dtype=jnp.bfloat16,
                     out_dtype=jnp.float32):
    """Fused online + target network forward in a single pallas_call.

    Returns (q_online, q_target), each (batch, n_actions).
    """
    ow1, ob1, ow2, ob2, ow3, ob3 = online_padded
    tw1, tb1_, tw2, tb2_, tw3, tb3_ = target_padded
    assert ow3.shape == tw3.shape, "online/target must be padded identically"

    batch, in_dims = state.shape
    n_act_pad = ow3.shape[1]

    tb, grid_steps, batch_pad = _batch_tiling(batch, block_batch)
    if batch_pad != batch:
        state = jnp.pad(state, ((0, batch_pad - batch), (0, 0)))

    q_spec = pl.BlockSpec((tb, n_act_pad), lambda i: (i, 0))
    qo, qt = pl.pallas_call(
        functools.partial(_dual_mlp_kernel, mxu_dtype=mxu_dtype),
        out_shape=(jax.ShapeDtypeStruct((batch_pad, n_act_pad), out_dtype),
                   jax.ShapeDtypeStruct((batch_pad, n_act_pad), out_dtype)),
        grid_spec=pltpu.PrefetchScalarGridSpec(
            num_scalar_prefetch=0,
            grid=(grid_steps,),
            in_specs=[
                pl.BlockSpec((tb, in_dims), lambda i: (i, 0)),
                _const_spec(ow1), _const_spec(ob1),
                _const_spec(ow2), _const_spec(ob2),
                _const_spec(ow3), _const_spec(ob3),
                _const_spec(tw1), _const_spec(tb1_),
                _const_spec(tw2), _const_spec(tb2_),
                _const_spec(tw3), _const_spec(tb3_),
            ],
            out_specs=[q_spec, q_spec],
        ),
        compiler_params=pltpu.CompilerParams(
            dimension_semantics=("parallel",),
            vmem_limit_bytes=32 << 20,
        ),
    )(state, ow1, ob1, ow2, ob2, ow3, ob3, tw1, tb1_, tw2, tb2_, tw3, tb3_)

    return qo[:batch, :n_actions], qt[:batch, :n_actions]


def dqn_forward_ref(state, params):
    """Pure-JAX reference for correctness check (unpadded f32 params)."""
    w1, b1, w2, b2, w3, b3 = params
    h1 = jnp.maximum(state @ w1 + b1, 0.0)
    h2 = jnp.maximum(h1 @ w2 + b2, 0.0)
    return h2 @ w3 + b3


# TODO(synk): the surrounding agent logic (Adam optimizer, MSELoss, exploration
# probability decay, device placement) lives outside forward() and is not a
# kernel; only the forward pass (and the fused online+target variant) is ported.

if __name__ == "__main__":
    # Shapes consistent with the module: batch=32 (the module's batch_size),
    # input_dims=8, fc1_dims=32, fc2_dims=32, n_actions=4.
    batch, input_dims, fc1_dims, fc2_dims, n_actions = 32, 8, 32, 32, 4

    key = jax.random.PRNGKey(0)
    k_state, k_online, k_target, k_big = jax.random.split(key, 4)
    state = jax.random.normal(k_state, (batch, input_dims), jnp.float32)
    online = init_params(k_online, input_dims, fc1_dims, fc2_dims, n_actions)
    target = init_params(k_target, input_dims, fc1_dims, fc2_dims, n_actions)
    ref = dqn_forward_ref(state, online)

    # --- f32 debug path (f32-stored weights, f32 MXU operands): tight tolerance ---
    online_f32 = prepare_params(online, weight_dtype=jnp.float32)
    q_f32 = jax.block_until_ready(
        dqn_forward(state, online_f32, n_actions, mxu_dtype=jnp.float32))
    assert q_f32.shape == (batch, n_actions)
    assert jnp.allclose(q_f32, ref, atol=1e-5, rtol=1e-5), "f32 mismatch vs reference"

    # --- default perf path: bf16-stored weights, bf16 MXU operands, f32 accumulate ---
    online_bf16 = prepare_params(online)
    target_bf16 = prepare_params(target)
    q_bf16 = jax.block_until_ready(dqn_forward(state, online_bf16, n_actions))
    assert jnp.allclose(q_bf16, ref, atol=5e-2, rtol=5e-2), "bf16 mismatch vs reference"

    # --- large, non-multiple batch: even-split tiling + >=2 parallel grid steps ---
    big_batch = 1037
    big_state = jax.random.normal(k_big, (big_batch, input_dims), jnp.float32)
    big_ref = dqn_forward_ref(big_state, online)
    big_q = jax.block_until_ready(dqn_forward(big_state, online_bf16, n_actions))
    assert big_q.shape == (big_batch, n_actions)
    assert jnp.allclose(big_q, big_ref, atol=5e-2, rtol=5e-2), "grid mismatch vs reference"

    # --- fused online + target forward (one launch, shared state DMA) ---
    qo, qt = jax.block_until_ready(
        dqn_forward_dual(big_state, online_bf16, target_bf16, n_actions))
    target_ref = dqn_forward_ref(big_state, target)
    assert qo.shape == (big_batch, n_actions) and qt.shape == (big_batch, n_actions)
    assert jnp.allclose(qo, big_ref, atol=5e-2, rtol=5e-2), "dual online mismatch"
    assert jnp.allclose(qt, target_ref, atol=5e-2, rtol=5e-2), "dual target mismatch"

    print("KERNEL_OK")
</pallas_src>

<mosaic_0001>
module attributes {stable_mosaic.version = 11 : i64} {
  func.func @_mlp_kernel(%arg0: i32, %arg1: memref<32x8xf32, #tpu.memory_space<vmem>>, %arg2: memref<8x128xf32, #tpu.memory_space<vmem>>, %arg3: memref<1x128xf32, #tpu.memory_space<vmem>>, %arg4: memref<128x128xf32, #tpu.memory_space<vmem>>, %arg5: memref<1x128xf32, #tpu.memory_space<vmem>>, %arg6: memref<128x128xf32, #tpu.memory_space<vmem>>, %arg7: memref<1x128xf32, #tpu.memory_space<vmem>>, %arg8: memref<32x128xf32, #tpu.memory_space<vmem>>) attributes {dimension_semantics = [#tpu.dimension_semantics<parallel>], iteration_bounds = array<i64: 1>, scalar_prefetch = 0 : i64, scratch_operands = 0 : i64, tpu.core_type = #tpu.core_type<tc>, window_params = [{transform_indices = @transform_0, window_bounds = array<i64: 32, 8>}, {pipeline_mode = #tpu.pipeline_mode<synchronous>, transform_indices = @transform_1, window_bounds = array<i64: 8, 128>}, {pipeline_mode = #tpu.pipeline_mode<synchronous>, transform_indices = @transform_2, window_bounds = array<i64: 1, 128>}, {pipeline_mode = #tpu.pipeline_mode<synchronous>, transform_indices = @transform_3, window_bounds = array<i64: 128, 128>}, {pipeline_mode = #tpu.pipeline_mode<synchronous>, transform_indices = @transform_4, window_bounds = array<i64: 1, 128>}, {pipeline_mode = #tpu.pipeline_mode<synchronous>, transform_indices = @transform_5, window_bounds = array<i64: 128, 128>}, {pipeline_mode = #tpu.pipeline_mode<synchronous>, transform_indices = @transform_6, window_bounds = array<i64: 1, 128>}, {transform_indices = @transform_7, window_bounds = array<i64: 32, 128>}]} {
    %c0 = arith.constant 0 : index
    %c0_0 = arith.constant 0 : index
    %0 = vector.load %arg1[%c0, %c0_0] : memref<32x8xf32, #tpu.memory_space<vmem>>, vector<32x8xf32>
    %c0_1 = arith.constant 0 : index
    %c0_2 = arith.constant 0 : index
    %1 = vector.load %arg2[%c0_1, %c0_2] : memref<8x128xf32, #tpu.memory_space<vmem>>, vector<8x128xf32>
    %cst = arith.constant dense<0.000000e+00> : vector<32x128xf32>
    %2 = tpu.matmul %0, %1, %cst {dimension_numbers = #tpu.dot_dimension_numbers<[1], [0], [0], [1], [0, 0, 1, 1], [], []>} : vector<32x8xf32>, vector<8x128xf32>, vector<32x128xf32> -> vector<32x128xf32>
    %c0_3 = arith.constant 0 : index
    %c0_4 = arith.constant 0 : index
    %3 = vector.load %arg3[%c0_3, %c0_4] : memref<1x128xf32, #tpu.memory_space<vmem>>, vector<1x128xf32>
    %4 = vector.broadcast %3 : vector<1x128xf32> to vector<32x128xf32>
    %5 = arith.addf %2, %4 : vector<32x128xf32>
    %cst_5 = arith.constant 0.000000e+00 : f32
    %6 = vector.broadcast %cst_5 : f32 to vector<32x128xf32>
    %7 = arith.maximumf %5, %6 : vector<32x128xf32>
    %c0_6 = arith.constant 0 : index
    %c0_7 = arith.constant 0 : index
    %8 = vector.load %arg4[%c0_6, %c0_7] : memref<128x128xf32, #tpu.memory_space<vmem>>, vector<128x128xf32>
    %cst_8 = arith.constant dense<0.000000e+00> : vector<32x128xf32>
    %9 = tpu.matmul %7, %8, %cst_8 {dimension_numbers = #tpu.dot_dimension_numbers<[1], [0], [0], [1], [0, 0, 1, 1], [], []>} : vector<32x128xf32>, vector<128x128xf32>, vector<32x128xf32> -> vector<32x128xf32>
    %c0_9 = arith.constant 0 : index
    %c0_10 = arith.constant 0 : index
    %10 = vector.load %arg5[%c0_9, %c0_10] : memref<1x128xf32, #tpu.memory_space<vmem>>, vector<1x128xf32>
    %11 = vector.broadcast %10 : vector<1x128xf32> to vector<32x128xf32>
    %12 = arith.addf %9, %11 : vector<32x128xf32>
    %cst_11 = arith.constant 0.000000e+00 : f32
    %13 = vector.broadcast %cst_11 : f32 to vector<32x128xf32>
    %14 = arith.maximumf %12, %13 : vector<32x128xf32>
    %c0_12 = arith.constant 0 : index
    %c0_13 = arith.constant 0 : index
    %15 = vector.load %arg6[%c0_12, %c0_13] : memref<128x128xf32, #tpu.memory_space<vmem>>, vector<128x128xf32>
    %cst_14 = arith.constant dense<0.000000e+00> : vector<32x128xf32>
    %16 = tpu.matmul %14, %15, %cst_14 {dimension_numbers = #tpu.dot_dimension_numbers<[1], [0], [0], [1], [0, 0, 1, 1], [], []>} : vector<32x128xf32>, vector<128x128xf32>, vector<32x128xf32> -> vector<32x128xf32>
    %c0_15 = arith.constant 0 : index
    %c0_16 = arith.constant 0 : index
    %17 = vector.load %arg7[%c0_15, %c0_16] : memref<1x128xf32, #tpu.memory_space<vmem>>, vector<1x128xf32>
    %18 = vector.broadcast %17 : vector<1x128xf32> to vector<32x128xf32>
    %19 = arith.addf %16, %18 : vector<32x128xf32>
    %c0_17 = arith.constant 0 : index
    %c0_18 = arith.constant 0 : index
    %20 = vector.load %arg8[%c0_17, %c0_18] : memref<32x128xf32, #tpu.memory_space<vmem>>, vector<32x128xf32>
    tpu.vector_store %arg8[%c0_17, %c0_18], %19 {strides = array<i32>} : memref<32x128xf32, #tpu.memory_space<vmem>>, vector<32x128xf32>,
    return
  }
  func.func @transform_0(%arg0: i32) -> (i32, i32) {
    %c0_i32 = arith.constant 0 : i32
    %c0_i32_0 = arith.constant 0 : i32
    return %arg0, %c0_i32 : i32, i32
  }
  func.func @transform_1(%arg0: i32) -> (i32, i32) {
    %c0_i32 = arith.constant 0 : i32
    %c0_i32_0 = arith.constant 0 : i32
    %c0_i32_1 = arith.constant 0 : i32
    return %c0_i32, %c0_i32_0 : i32, i32
  }
  func.func @transform_2(%arg0: i32) -> (i32, i32) {
    %c0_i32 = arith.constant 0 : i32
    %c0_i32_0 = arith.constant 0 : i32
    %c0_i32_1 = arith.constant 0 : i32
    return %c0_i32, %c0_i32_0 : i32, i32
  }
  func.func @transform_3(%arg0: i32) -> (i32, i32) {
    %c0_i32 = arith.constant 0 : i32
    %c0_i32_0 = arith.constant 0 : i32
    %c0_i32_1 = arith.constant 0 : i32
    return %c0_i32, %c0_i32_0 : i32, i32
  }
  func.func @transform_4(%arg0: i32) -> (i32, i32) {
    %c0_i32 = arith.constant 0 : i32
    %c0_i32_0 = arith.constant 0 : i32
    %c0_i32_1 = arith.constant 0 : i32
    return %c0_i32, %c0_i32_0 : i32, i32
  }
  func.func @transform_5(%arg0: i32) -> (i32, i32) {
    %c0_i32 = arith.constant 0 : i32
    %c0_i32_0 = arith.constant 0 : i32
    %c0_i32_1 = arith.constant 0 : i32
    return %c0_i32, %c0_i32_0 : i32, i32
  }
  func.func @transform_6(%arg0: i32) -> (i32, i32) {
    %c0_i32 = arith.constant 0 : i32
    %c0_i32_0 = arith.constant 0 : i32
    %c0_i32_1 = arith.constant 0 : i32
    return %c0_i32, %c0_i32_0 : i32, i32
  }
  func.func @transform_7(%arg0: i32) -> (i32, i32) {
    %c0_i32 = arith.constant 0 : i32
    %c0_i32_0 = arith.constant 0 : i32
    return %arg0, %c0_i32 : i32, i32
  }
}

</mosaic_0001>

<llo_original>
// kernel: tpu_custom_call.1
$region0: #{tpu_custom_call.1}
  #allocation0 [shape = 'u32[]', space=smem, size = 0x4, offset = 0x4, fixed_abs, tag = 'smem constant byte address 0x4 - core index']
  #allocation1 [shape = 'u32[72,128]{1,0:T(1,128)}', space=vmem, size = 0x9000, scoped, tag = 'internal scratch']
  %s0 = inlined_call_operand.vmem [shape: f32[32,8], index: 0, kind: input, shape index: {}]
  %s1 = inlined_call_operand.vmem [shape: f32[8,128], index: 1, kind: input, shape index: {}]
  %s2 = inlined_call_operand.vmem [shape: f32[1,128], index: 2, kind: input, shape index: {}]
  %s3 = inlined_call_operand.hbm [shape: f32[128,128], index: 3, kind: input, shape index: {}]
  %s4 = inlined_call_operand.vmem [shape: f32[1,128], index: 4, kind: input, shape index: {}]
  %s5 = inlined_call_operand.hbm [shape: f32[128,128], index: 5, kind: input, shape index: {}]
  %s6 = inlined_call_operand.vmem [shape: f32[1,128], index: 6, kind: input, shape index: {}]
  %s7 = inlined_call_operand.hbm [shape: f32[32,128], index: 7, kind: output, shape index: {}]
  %s8 = sld [smem:[#allocation0]]
  $region46: #{tpu_custom_call.1} parent=0
    _
  %s10 = ssub.s32 1, %s8
  %s11 = scalar_select 0, %s10, %s8
  $region1: #{tpu_custom_call.1} parent=0
    #allocation2 [shape = 'u8[65536]{0}', space=vmem, size = 0x10000, scoped, tag = 'input window, operand 3, single buffered']
    #allocation3 [shape = 's32[1]{0}', space=sflag, size = 0x4, scoped, tag = 'scoped memory for tpu_custom_call.1']
    #allocation4 [shape = 's32[1]{0}', space=sflag, size = 0x4, scoped, tag = 'scoped memory for tpu_custom_call.1']
    #allocation5 [shape = 'u8[65536]{0}', space=vmem, size = 0x10000, scoped, tag = 'input window, operand 5, single buffered']
    #allocation6 [shape = 's32[1]{0}', space=sflag, size = 0x4, scoped, tag = 'scoped memory for tpu_custom_call.1']
    #allocation7 [shape = 'u8[16384]{0}', space=vmem, size = 0x4000, scoped, tag = 'output window, operand 0, single buffered']
    %12 = vsyncpa [#allocation3], 0
    %13 = vsyncpa [#allocation6], 0
    %14 = vsyncpa [#allocation4], 0
    // Predicated region
    $region2: #{tpu_custom_call.1} parent=1 // pred_check
      _
    $region3: #{tpu_custom_call.1} parent=1 // pred_check_branch
      %16 = sbr.rel (0) target = $region5
    $region4: #{tpu_custom_call.1} parent=1 // pred_region
      _
    $region5: #{tpu_custom_call.1} parent=1 // pred_fallthru
      _
    // Predicated region
    $region6: #{tpu_custom_call.1} parent=1 // pred_check
      _
    $region7: #{tpu_custom_call.1} parent=1 // pred_check_branch
      %18 = sbr.rel (0) target = $region9
    $region8: #{tpu_custom_call.1} parent=1 // pred_region
      _
    $region9: #{tpu_custom_call.1} parent=1 // pred_fallthru
      _
    // Predicated region
    $region10: #{tpu_custom_call.1} parent=1 // pred_check
      _
    $region11: #{tpu_custom_call.1} parent=1 // pred_check_branch
      %20 = sbr.rel (0) target = $region13
    $region12: #{tpu_custom_call.1} parent=1 // pred_region
      _
    $region13: #{tpu_custom_call.1} parent=1 // pred_fallthru
      _
    // Predicated region
    $region14: #{tpu_custom_call.1} parent=1 // pred_check
      _
    $region15: #{tpu_custom_call.1} parent=1 // pred_check_branch
      %22 = sbr.rel (0) target = $region17
    $region16: #{tpu_custom_call.1} parent=1 // pred_region
      %24 = vsyncadd [#allocation3], 0
      %s25 = sshll.u32 %s3, 4
      %s26 = int_to_ptr.hbm [resolvable:$true] %s25
      %s27 = sshll.u32 [#allocation2], 4
      %s28 = int_to_ptr.vmem [resolvable:$true] %s27
      %33 = dma.hbm_to_vmem [thread:$0]  %s26, 2048, %s28, [#allocation3], 128, 128, 8
    $region17: #{tpu_custom_call.1} parent=1 // pred_fallthru
      _
    // Predicated region
    $region18: #{tpu_custom_call.1} parent=1 // pred_check
      _
    $region19: #{tpu_custom_call.1} parent=1 // pred_check_branch
      %35 = sbr.rel (0) target = $region21
    $region20: #{tpu_custom_call.1} parent=1 // pred_region
      _
    $region21: #{tpu_custom_call.1} parent=1 // pred_fallthru
      _
    // Predicated region
    $region22: #{tpu_custom_call.1} parent=1 // pred_check
      _
    $region23: #{tpu_custom_call.1} parent=1 // pred_check_branch
      %37 = sbr.rel (0) target = $region25
    $region24: #{tpu_custom_call.1} parent=1 // pred_region
      %39 = vsyncadd [#allocation6], 0
      %s40 = sshll.u32 %s5, 4
      %s41 = int_to_ptr.hbm [resolvable:$true] %s40
      %s42 = sshll.u32 [#allocation5], 4
      %s43 = int_to_ptr.vmem [resolvable:$true] %s42
      %48 = dma.hbm_to_vmem [thread:$0]  %s41, 2048, %s43, [#allocation6], 128, 128, 8
    $region25: #{tpu_custom_call.1} parent=1 // pred_fallthru
      _
    // Predicated region
    $region26: #{tpu_custom_call.1} parent=1 // pred_check
      _
    $region27: #{tpu_custom_call.1} parent=1 // pred_check_branch
      %50 = sbr.rel (0) target = $region29
    $region28: #{tpu_custom_call.1} parent=1 // pred_region
      _
    $region29: #{tpu_custom_call.1} parent=1 // pred_fallthru
      _
    // Predicated region
    $region30: #{tpu_custom_call.1} parent=1 // pred_check
      _
    $region31: #{tpu_custom_call.1} parent=1 // pred_check_branch
      %52 = sbr.rel (0) target = $region33
    $region32: #{tpu_custom_call.1} parent=1 // pred_region
      %54 = dma.done [#allocation3], 2048
    $region33: #{tpu_custom_call.1} parent=1 // pred_fallthru
      _
    // Predicated region
    $region34: #{tpu_custom_call.1} parent=1 // pred_check
      _
    $region35: #{tpu_custom_call.1} parent=1 // pred_check_branch
      %56 = sbr.rel (0) target = $region37
    $region36: #{tpu_custom_call.1} parent=1 // pred_region
      %58 = dma.done [#allocation6], 2048
    $region37: #{tpu_custom_call.1} parent=1 // pred_fallthru
      _
    %v59 = vld [vmem:[%s0] sm:$0xff]
    %v60 = vld [vmem:[%s0 + $0x8] sm:$0xff]
    %v61 = vld [vmem:[%s0 + $0x10] sm:$0xff]
    %v62 = vld [vmem:[%s0 + $0x18] sm:$0xff]
    %v63 = vld [vmem:[%s1] sm:$0xff]
    %v64 = vld [vmem:[%s2] sm:$0x1]
    %v66 = vperm.slane %v64, 0
    %vm68 = vcmask 64512
    %v70 = vsel %vm68, %v59, 0
    %v73 = vsel %vm68, %v60, 0
    %v76 = vsel %vm68, %v61, 0
    %v79 = vsel %vm68, %v62, 0
    %81 = vmatpush.msra.mxu0 0.0
    %82 = vmatpush.msra.mxu0 0.0
    %83 = vmatpush.msra.mxu0 0.0
    %84 = vmatpush.msra.mxu0 0.0
    %85 = vmatpush.msra.mxu0 0.0
    %86 = vmatpush.msra.mxu0 0.0
    %87 = vmatpush.msra.mxu0 0.0
    %88 = vmatpush.msra.mxu0 0.0
    %89 = vmatpush.msra.mxu0 0.0
    %90 = vmatpush.msra.mxu0 0.0
    %91 = vmatpush.msra.mxu0 0.0
    %92 = vmatpush.msra.mxu0 0.0
    %93 = vmatpush.msra.mxu0 0.0
    %94 = vmatpush.msra.mxu0 0.0
    %95 = vmatpush.msra.mxu0 0.0
    %96 = vmatpush.msra.mxu0 %v63
    %97 = vmatmul.f32.gmra.mxu0 %v70
    %v98 = vpop.f32.mrf.mxu0
    %v99 = vadd.f32 %v66, %v98
    %100 = vmatmul.f32.gmra.mxu0 %v73
    %v101 = vpop.f32.mrf.mxu0
    %v102 = vadd.f32 %v66, %v101
    %103 = vmatmul.f32.gmra.mxu0 %v76
    %v104 = vpop.f32.mrf.mxu0
    %v105 = vadd.f32 %v66, %v104
    %106 = vmatmul.f32.gmra.mxu0 %v79
    %v107 = vpop.f32.mrf.mxu0
    %v108 = vadd.f32 %v66, %v107
    %109 = vdwg.mxu0
    %v110 = vmax.f32 %v99, 0.0
    %v111 = vmax.f32 %v102, 0.0
    %v112 = vmax.f32 %v105, 0.0
    %v113 = vmax.f32 %v108, 0.0
    %v114 = vld [vmem:[#allocation2] sm:$0xff]
    %v115 = vld [vmem:[#allocation2 + $0x8] sm:$0xff]
    %v116 = vld [vmem:[#allocation2 + $0x10] sm:$0xff]
    %v117 = vld [vmem:[#allocation2 + $0x18] sm:$0xff]
    %v118 = vld [vmem:[#allocation2 + $0x20] sm:$0xff]
    %v119 = vld [vmem:[#allocation2 + $0x28] sm:$0xff]
    %v120 = vld [vmem:[#allocation2 + $0x30] sm:$0xff]
    %v121 = vld [vmem:[#allocation2 + $0x38] sm:$0xff]
    %v122 = vld [vmem:[#allocation2 + $0x40] sm:$0xff]
    %v123 = vld [vmem:[#allocation2 + $0x48] sm:$0xff]
    %v124 = vld [vmem:[#allocation2 + $0x50] sm:$0xff]
    %v125 = vld [vmem:[#allocation2 + $0x58] sm:$0xff]
    %v126 = vld [vmem:[#allocation2 + $0x60] sm:$0xff]
    %v127 = vld [vmem:[#allocation2 + $0x68] sm:$0xff]
    %v128 = vld [vmem:[#allocation2 + $0x70] sm:$0xff]
    %v129 = vld [vmem:[#allocation2 + $0x78] sm:$0xff]
    %v130 = vld [vmem:[%s4] sm:$0x1]
    %v132 = vperm.slane %v130, 0
    %134 = vmatpush.msra.mxu0 %v129
    %135 = vmatpush.msra.mxu0 %v128
    %136 = vmatpush.msra.mxu0 %v127
    %137 = vmatpush.msra.mxu0 %v126
    %138 = vmatpush.msra.mxu0 %v125
    %139 = vmatpush.msra.mxu0 %v124
    %140 = vmatpush.msra.mxu0 %v123
    %141 = vmatpush.msra.mxu0 %v122
    %142 = vmatpush.msra.mxu0 %v121
    %143 = vmatpush.msra.mxu0 %v120
    %144 = vmatpush.msra.mxu0 %v119
    %145 = vmatpush.msra.mxu0 %v118
    %146 = vmatpush.msra.mxu0 %v117
    %147 = vmatpush.msra.mxu0 %v116
    %148 = vmatpush.msra.mxu0 %v115
    %149 = vmatpush.msra.mxu0 %v114
    %150 = vmatmul.f32.gmra.mxu0 %v110
    %v151 = vpop.f32.mrf.mxu0
    %v152 = vadd.f32 %v132, %v151
    %153 = vmatmul.f32.gmra.mxu0 %v111
    %v154 = vpop.f32.mrf.mxu0
    %v155 = vadd.f32 %v132, %v154
    %156 = vmatmul.f32.gmra.mxu0 %v112
    %v157 = vpop.f32.mrf.mxu0
    %v158 = vadd.f32 %v132, %v157
    %159 = vmatmul.f32.gmra.mxu0 %v113
    %v160 = vpop.f32.mrf.mxu0
    %v161 = vadd.f32 %v132, %v160
    %162 = vdwg.mxu0
    %v163 = vmax.f32 %v152, 0.0
    %v164 = vmax.f32 %v155, 0.0
    %v165 = vmax.f32 %v158, 0.0
    %v166 = vmax.f32 %v161, 0.0
    %v167 = vld [vmem:[#allocation5] sm:$0xff]
    %v168 = vld [vmem:[#allocation5 + $0x8] sm:$0xff]
    %v169 = vld [vmem:[#allocation5 + $0x10] sm:$0xff]
    %v170 = vld [vmem:[#allocation5 + $0x18] sm:$0xff]
    %v171 = vld [vmem:[#allocation5 + $0x20] sm:$0xff]
    %v172 = vld [vmem:[#allocation5 + $0x28] sm:$0xff]
    %v173 = vld [vmem:[#allocation5 + $0x30] sm:$0xff]
    %v174 = vld [vmem:[#allocation5 + $0x38] sm:$0xff]
    %v175 = vld [vmem:[#allocation5 + $0x40] sm:$0xff]
    %v176 = vld [vmem:[#allocation5 + $0x48] sm:$0xff]
    %v177 = vld [vmem:[#allocation5 + $0x50] sm:$0xff]
    %v178 = vld [vmem:[#allocation5 + $0x58] sm:$0xff]
    %v179 = vld [vmem:[#allocation5 + $0x60] sm:$0xff]
    %v180 = vld [vmem:[#allocation5 + $0x68] sm:$0xff]
    %v181 = vld [vmem:[#allocation5 + $0x70] sm:$0xff]
    %v182 = vld [vmem:[#allocation5 + $0x78] sm:$0xff]
    %v183 = vld [vmem:[%s6] sm:$0x1]
    %v185 = vperm.slane %v183, 0
    %187 = vmatpush.msra.mxu0 %v182
    %188 = vmatpush.msra.mxu0 %v181
    %189 = vmatpush.msra.mxu0 %v180
    %190 = vmatpush.msra.mxu0 %v179
    %191 = vmatpush.msra.mxu0 %v178
    %192 = vmatpush.msra.mxu0 %v177
    %193 = vmatpush.msra.mxu0 %v176
    %194 = vmatpush.msra.mxu0 %v175
    %195 = vmatpush.msra.mxu0 %v174
    %196 = vmatpush.msra.mxu0 %v173
    %197 = vmatpush.msra.mxu0 %v172
    %198 = vmatpush.msra.mxu0 %v171
    %199 = vmatpush.msra.mxu0 %v170
    %200 = vmatpush.msra.mxu0 %v169
    %201 = vmatpush.msra.mxu0 %v168
    %202 = vmatpush.msra.mxu0 %v167
    %203 = vmatmul.f32.gmra.mxu0 %v163
    %v204 = vpop.f32.mrf.mxu0
    %v205 = vadd.f32 %v185, %v204
    %206 = vmatmul.f32.gmra.mxu0 %v164
    %v207 = vpop.f32.mrf.mxu0
    %v208 = vadd.f32 %v185, %v207
    %209 = vmatmul.f32.gmra.mxu0 %v165
    %v210 = vpop.f32.mrf.mxu0
    %v211 = vadd.f32 %v185, %v210
    %212 = vmatmul.f32.gmra.mxu0 %v166
    %v213 = vpop.f32.mrf.mxu0
    %v214 = vadd.f32 %v185, %v213
    %215 = vdwg.mxu0
    %216 = vst [vmem:[#allocation7] sm:$0xff] %v205
    %217 = vst [vmem:[#allocation7 + $0x8] sm:$0xff] %v208
    %218 = vst [vmem:[#allocation7 + $0x10] sm:$0xff] %v211
    %219 = vst [vmem:[#allocation7 + $0x18] sm:$0xff] %v214
    // Predicated region
    $region38: #{tpu_custom_call.1} parent=1 // pred_check
      _
    $region39: #{tpu_custom_call.1} parent=1 // pred_check_branch
      %221 = sbr.rel (0) target = $region41
    $region40: #{tpu_custom_call.1} parent=1 // pred_region
      %223 = vsyncadd [#allocation4], 0
      %s224 = sshll.u32 [#allocation7], 4
      %s225 = int_to_ptr.vmem [resolvable:$true] %s224
      %s226 = sshll.u32 %s7, 4
      %s227 = int_to_ptr.hbm [resolvable:$true] %s226
      %232 = dma.vmem_to_hbm [thread:$0]  %s225, 512, %s227, [#allocation4], 128, 128, 8
    $region41: #{tpu_custom_call.1} parent=1 // pred_fallthru
      _
    // Predicated region
    $region42: #{tpu_custom_call.1} parent=1 // pred_check
      _
    $region43: #{tpu_custom_call.1} parent=1 // pred_check_branch
      %234 = sbr.rel (0) target = $region45
    $region44: #{tpu_custom_call.1} parent=1 // pred_region
      %236 = dma.done [#allocation4], 512
    $region45: #{tpu_custom_call.1} parent=1 // pred_fallthru
      _
    %237 = vsyncpa [#allocation3], 1
    %238 = vsyncpa [#allocation6], 1
    %239 = vsyncpa [#allocation4], 1

</llo_original>
